<compile_context>
chip_gen: v6e
topology: v6e:2x2x1
jax: 0.10.0
libtpu: 0.0.40
codegen_flags: <defaults>
</compile_context>

<pallas_src>
import functools
import math

import jax
import jax.numpy as jnp
from jax.experimental import pallas as pl
from jax.experimental.pallas import tpu as pltpu

LANES = 128
SUBLANES = 8
_SINGLE_PASS_MAX_ROWS = 512     # per-head whole-slab path only for genuinely small inputs
_TILED_MAX_BLOCK_ROWS = 2048    # 4 inputs x 2 bufs x 2048x128 f32 = 8 MiB VMEM (under 32 MiB scoped)
_LN2 = math.log(2.0)


def _num_tensorcores():
    """2 TensorCores per chip on v7x, 1 on v5e/v6e.  Wrong detection only affects perf."""
    try:
        dev = jax.devices()[0]
        if dev.platform != "tpu":
            return 1
        return 2 if "v7" in dev.device_kind.lower() else 1
    except Exception:
        return 1


def _sse_term(p_ref, t_ref):
    # Upcast per sub-expression (keeps bf16 inputs narrow until the VPU op).
    d = p_ref[...].astype(jnp.float32) - t_ref[...].astype(jnp.float32)
    return d * d


def _bce_term(x_ref, t_ref):
    # Numerically stable BCE-with-logits: max(x,0) - x*t + log1p(exp(-|x|)).
    x = x_ref[...].astype(jnp.float32)
    t = t_ref[...].astype(jnp.float32)
    return jnp.maximum(x, 0.0) - x * t + jnp.log1p(jnp.exp(-jnp.abs(x)))


def _single_pass_kernel(scales_ref, p1_ref, t1_ref, p2_ref, t2_ref, out_ref):
    sse = jnp.sum(_sse_term(p1_ref, t1_ref))
    sbce = jnp.sum(_bce_term(p2_ref, t2_ref))
    # scales[0] = weight / N1, scales[1] = 1 / N2   (aggregate == 'sum')
    result = scales_ref[0] * sse + scales_ref[1] * sbce
    out_ref[...] = jnp.full(out_ref.shape, result, dtype=jnp.float32)


def _tiled_kernel(block_rows, tiles_per_core, valid_rows, needs_mask,
                  scales_ref, p1_ref, t1_ref, p2_ref, t2_ref, out_ref,
                  acc1_ref, acc2_ref):
    c = pl.program_id(0)   # TensorCore partition ("parallel")
    i = pl.program_id(1)   # streaming tile within the core's range ("arbitrary")

    @pl.when(i == 0)
    def _init():
        acc1_ref[...] = jnp.zeros_like(acc1_ref)
        acc2_ref[...] = jnp.zeros_like(acc2_ref)

    sq = _sse_term(p1_ref, t1_ref)
    bce = _bce_term(p2_ref, t2_ref)

    if needs_mask:
        # Only the ragged tail tile (or phantom per-core tiles) has rows >= valid_rows;
        # mask those contributions to zero.  Pure VPU filler on an HBM-bound kernel.
        row0 = (c * tiles_per_core + i) * block_rows
        rid = jax.lax.broadcasted_iota(jnp.int32, (block_rows, LANES), 0) + row0
        m = rid < valid_rows
        sq = jnp.where(m, sq, 0.0)
        bce = jnp.where(m, bce, 0.0)

    # Fold (block_rows, 128) -> single vreg (8, 128): pure VPU vreg adds, no XLU,
    # accumulator traffic is 8 KiB/step instead of MiBs.
    sq = jnp.sum(sq.reshape(block_rows // SUBLANES, SUBLANES, LANES), axis=0)
    bce = jnp.sum(bce.reshape(block_rows // SUBLANES, SUBLANES, LANES), axis=0)
    acc1_ref[...] += sq
    acc2_ref[...] += bce

    @pl.when(i == tiles_per_core - 1)
    def _finalize():
        partial = (scales_ref[0] * jnp.sum(acc1_ref[...])
                   + scales_ref[1] * jnp.sum(acc2_ref[...]))
        out_ref[...] = jnp.full(out_ref.shape, partial, dtype=jnp.float32)


def _flatten_pad(x):
    """Flatten to (rows, 128) with rows % 8 == 0, zero-padding the tail; keeps native dtype."""
    n = int(x.size)
    rows = pl.cdiv(n, SUBLANES * LANES) * SUBLANES
    n_pad = rows * LANES
    flat = x.reshape(-1)
    if n_pad != n:
        flat = jnp.pad(flat, (0, n_pad - n))
    return flat.reshape(rows, LANES), n


def _pad_rows(xf, rows):
    r = xf.shape[0]
    return xf if r == rows else jnp.pad(xf, ((0, rows - r), (0, 0)))


def combination_loss(net_output, target, *, weight=1.0, aggregate="sum"):
    """weight * MSE(net_output[0], target[0]) + BCEWithLogits(net_output[1], target[1])."""
    if not isinstance(net_output, tuple) or len(net_output) != 2:
        raise ValueError("net_output must be a tuple of size 2")
    if aggregate != "sum":
        raise NotImplementedError
    p1, p2 = net_output
    t1, t2 = target
    # TODO(synk): ensure_same_dim only reconciles unsqueezed dims; for these elementwise
    # losses equal element counts (same flattened order) are sufficient.
    assert p1.size == t1.size and p2.size == t2.size

    p1f, n1 = _flatten_pad(p1)
    t1f, _ = _flatten_pad(t1)
    p2f, n2 = _flatten_pad(p2)
    t2f, _ = _flatten_pad(t2)
    rows1, rows2 = p1f.shape[0], p2f.shape[0]

    # weight and the per-loss 1/N means folded into two runtime f32 scalars (SMEM scalar
    # prefetch): no Mosaic recompile when `weight` changes, and `weight` may be traced.
    scales = jnp.stack([jnp.asarray(weight, jnp.float32) / n1,
                        jnp.asarray(1.0 / n2, jnp.float32)])

    if max(rows1, rows2) <= _SINGLE_PASS_MAX_ROWS:
        # Tiny inputs: one grid step over whole (rows, 128) slabs, no accumulators.
        num_partials = 1
        grid_spec = pltpu.PrefetchScalarGridSpec(
            num_scalar_prefetch=1,
            grid=(1,),
            in_specs=[
                pl.BlockSpec((rows1, LANES), lambda i, s: (0, 0)),
                pl.BlockSpec((rows1, LANES), lambda i, s: (0, 0)),
                pl.BlockSpec((rows2, LANES), lambda i, s: (0, 0)),
                pl.BlockSpec((rows2, LANES), lambda i, s: (0, 0)),
            ],
            out_specs=pl.BlockSpec((1, SUBLANES, LANES), lambda i, s: (0, 0, 0)),
        )
        kernel = _single_pass_kernel
        semantics = ("arbitrary",)
        pad2 = rows2 * LANES - n2
    else:
        # Large inputs: HBM-bound streaming reduction.  Split the rows across the
        # TensorCores (2 on v7x) with a leading "parallel" axis; stream big tiles on the
        # inner "arbitrary" axis; keep a single-vreg accumulator per loss.
        num_cores = _num_tensorcores()
        rows = max(rows1, rows2)
        # TODO(synk): per-head kernels would avoid streaming padded zeros if the two heads
        # differ greatly in size; identical-size heads (the common case) pay nothing.
        p1f, t1f = _pad_rows(p1f, rows), _pad_rows(t1f, rows)
        p2f, t2f = _pad_rows(p2f, rows), _pad_rows(t2f, rows)

        per_core_rows = pl.cdiv(rows, num_cores)
        block_rows = min(_TILED_MAX_BLOCK_ROWS,
                         pl.cdiv(per_core_rows, SUBLANES) * SUBLANES)
        total_tiles = pl.cdiv(rows, block_rows)
        tiles_per_core = pl.cdiv(total_tiles, num_cores)
        needs_mask = (total_tiles * block_rows != rows
                      or tiles_per_core * num_cores != total_tiles)

        def tile_map(c, i, s):
            t = c * tiles_per_core + i
            # Clamp phantom tiles (odd tile counts / ragged tail) into range; the
            # in-kernel row mask zeroes their contribution.
            return (jnp.minimum(t, total_tiles - 1), 0)

        tile_spec = pl.BlockSpec((block_rows, LANES), tile_map)
        num_partials = num_cores
        grid_spec = pltpu.PrefetchScalarGridSpec(
            num_scalar_prefetch=1,
            grid=(num_cores, tiles_per_core),
            in_specs=[tile_spec, tile_spec, tile_spec, tile_spec],
            out_specs=pl.BlockSpec((1, SUBLANES, LANES), lambda c, i, s: (c, 0, 0)),
            scratch_shapes=[pltpu.VMEM((SUBLANES, LANES), jnp.float32),
                            pltpu.VMEM((SUBLANES, LANES), jnp.float32)],
        )
        kernel = functools.partial(_tiled_kernel, block_rows, tiles_per_core,
                                   rows, needs_mask)
        semantics = ("parallel", "arbitrary")
        pad2 = rows * LANES - n2

    # MXU-free, HBM-bound reduction: give XLA an accurate cost so it can overlap neighbors.
    in_bytes = sum(int(a.size) * a.dtype.itemsize for a in (p1f, t1f, p2f, t2f))
    cost = pl.CostEstimate(
        flops=int(3 * p1f.size + 6 * p2f.size),
        transcendentals=int(2 * p2f.size),
        bytes_accessed=int(in_bytes + num_partials * SUBLANES * LANES * 4),
    )

    out = pl.pallas_call(
        kernel,
        out_shape=jax.ShapeDtypeStruct((num_partials, SUBLANES, LANES), jnp.float32),
        grid_spec=grid_spec,
        compiler_params=pltpu.CompilerParams(dimension_semantics=semantics),
        cost_estimate=cost,
    )(scales, p1f, t1f, p2f, t2f)

    # Sum per-core partials.  Zero-padded BCE elements each contribute exactly log(2)
    # to the in-kernel sum (MSE padding contributes 0); correct analytically.
    result = jnp.sum(out[:, 0, 0])
    if pad2:
        result = result - (pad2 * _LN2) / n2
    return result


def _reference(net_output, target, *, weight=1.0):
    p1, p2 = net_output
    t1, t2 = target
    mse = jnp.mean((p1.astype(jnp.float32) - t1.astype(jnp.float32)) ** 2)
    x = p2.astype(jnp.float32)
    t = t2.astype(jnp.float32)
    bce = jnp.mean(jnp.maximum(x, 0.0) - x * t + jnp.log1p(jnp.exp(-jnp.abs(x))))
    return weight * mse + bce


if __name__ == "__main__":
    key = jax.random.PRNGKey(0)
    weight = 0.7

    def make_inputs(shape, salt):
        k1, k2, k3, k4 = jax.random.split(jax.random.fold_in(key, salt), 4)
        p1 = jax.random.normal(k1, shape, dtype=jnp.float32)            # regression head
        t1 = jax.random.normal(k2, shape, dtype=jnp.float32)            # regression target
        p2 = jax.random.normal(k3, shape, dtype=jnp.float32)            # classification logits
        t2 = (jax.random.uniform(k4, shape) > 0.5).astype(jnp.float32)  # binary target
        return (p1, p2), (t1, t2)

    shapes = [
        (2, 4, 16, 16),    # primary small NCHW case: single-pass path, fully aligned
        (2, 3, 17, 19),    # single-pass path with element padding + BCE correction
        (2, 8, 64, 128),   # tiled path (per-TensorCore streaming reduction)
        (1, 3, 123, 257),  # tiled path with ragged tail (masked partial tile)
    ]
    for salt, shape in enumerate(shapes):
        net_out, tgt = make_inputs(shape, salt)
        got = jax.block_until_ready(combination_loss(net_out, tgt, weight=weight))
        want = _reference(net_out, tgt, weight=weight)
        assert jnp.allclose(got, want, rtol=1e-4, atol=1e-5), (shape, got, want)

    print("KERNEL_OK")
</pallas_src>

<mosaic_0001>
module attributes {stable_mosaic.version = 11 : i64} {
  func.func @_single_pass_kernel(%arg0: i32, %arg1: memref<2xf32, #tpu.memory_space<smem>>, %arg2: memref<16x128xf32, #tpu.memory_space<vmem>>, %arg3: memref<16x128xf32, #tpu.memory_space<vmem>>, %arg4: memref<16x128xf32, #tpu.memory_space<vmem>>, %arg5: memref<16x128xf32, #tpu.memory_space<vmem>>, %arg6: memref<1x8x128xf32, #tpu.memory_space<vmem>>) attributes {dimension_semantics = [#tpu.dimension_semantics<arbitrary>], iteration_bounds = array<i64: 1>, scalar_prefetch = 1 : i64, scratch_operands = 0 : i64, tpu.core_type = #tpu.core_type<tc>, window_params = [{pipeline_mode = #tpu.pipeline_mode<synchronous>, transform_indices = @transform_0, window_bounds = array<i64: 16, 128>}, {pipeline_mode = #tpu.pipeline_mode<synchronous>, transform_indices = @transform_1, window_bounds = array<i64: 16, 128>}, {pipeline_mode = #tpu.pipeline_mode<synchronous>, transform_indices = @transform_2, window_bounds = array<i64: 16, 128>}, {pipeline_mode = #tpu.pipeline_mode<synchronous>, transform_indices = @transform_3, window_bounds = array<i64: 16, 128>}, {pipeline_mode = #tpu.pipeline_mode<synchronous>, transform_indices = @transform_4, window_bounds = array<i64: 1, 8, 128>}]} {
    %c0 = arith.constant 0 : index
    %c0_0 = arith.constant 0 : index
    %0 = vector.load %arg2[%c0, %c0_0] : memref<16x128xf32, #tpu.memory_space<vmem>>, vector<16x128xf32>
    %c0_1 = arith.constant 0 : index
    %c0_2 = arith.constant 0 : index
    %1 = vector.load %arg3[%c0_1, %c0_2] : memref<16x128xf32, #tpu.memory_space<vmem>>, vector<16x128xf32>
    %2 = arith.subf %0, %1 : vector<16x128xf32>
    %3 = arith.mulf %2, %2 : vector<16x128xf32>
    %4 = vector.shape_cast %3 : vector<16x128xf32> to vector<1x16x128xf32>
    %cst = arith.constant dense<0.000000e+00> : vector<1xf32>
    %5 = vector.multi_reduction <add>, %4, %cst [1, 2] : vector<1x16x128xf32> to vector<1xf32>
    %6 = vector.shape_cast %5 : vector<1xf32> to vector<1x1x1xf32>
    %7 = vector.extract %6[0, 0, 0] : f32 from vector<1x1x1xf32>
    %c0_3 = arith.constant 0 : index
    %c0_4 = arith.constant 0 : index
    %8 = vector.load %arg4[%c0_3, %c0_4] : memref<16x128xf32, #tpu.memory_space<vmem>>, vector<16x128xf32>
    %c0_5 = arith.constant 0 : index
    %c0_6 = arith.constant 0 : index
    %9 = vector.load %arg5[%c0_5, %c0_6] : memref<16x128xf32, #tpu.memory_space<vmem>>, vector<16x128xf32>
    %cst_7 = arith.constant 0.000000e+00 : f32
    %10 = vector.broadcast %cst_7 : f32 to vector<16x128xf32>
    %11 = arith.maximumf %8, %10 : vector<16x128xf32>
    %12 = arith.mulf %8, %9 : vector<16x128xf32>
    %13 = arith.subf %11, %12 : vector<16x128xf32>
    %14 = math.absf %8 : vector<16x128xf32>
    %cst_8 = arith.constant 0.000000e+00 : f32
    %15 = vector.broadcast %cst_8 : f32 to vector<16x128xf32>
    %16 = arith.subf %15, %14 : vector<16x128xf32>
    %17 = math.exp %16 : vector<16x128xf32>
    %18 = math.log1p %17 : vector<16x128xf32>
    %19 = arith.addf %13, %18 : vector<16x128xf32>
    %20 = vector.shape_cast %19 : vector<16x128xf32> to vector<1x16x128xf32>
    %cst_9 = arith.constant dense<0.000000e+00> : vector<1xf32>
    %21 = vector.multi_reduction <add>, %20, %cst_9 [1, 2] : vector<1x16x128xf32> to vector<1xf32>
    %22 = vector.shape_cast %21 : vector<1xf32> to vector<1x1x1xf32>
    %23 = vector.extract %22[0, 0, 0] : f32 from vector<1x1x1xf32>
    %c0_10 = arith.constant 0 : index
    %24 = memref.load %arg1[%c0_10] : memref<2xf32, #tpu.memory_space<smem>>
    %25 = arith.mulf %24, %7 : f32
    %c1 = arith.constant 1 : index
    %26 = memref.load %arg1[%c1] : memref<2xf32, #tpu.memory_space<smem>>
    %27 = arith.mulf %26, %23 : f32
    %28 = arith.addf %25, %27 : f32
    %29 = vector.broadcast %28 : f32 to vector<1x8x128xf32>
    %c0_11 = arith.constant 0 : index
    %c0_12 = arith.constant 0 : index
    %c0_13 = arith.constant 0 : index
    %30 = vector.load %arg6[%c0_11, %c0_12, %c0_13] : memref<1x8x128xf32, #tpu.memory_space<vmem>>, vector<1x8x128xf32>
    tpu.vector_store %arg6[%c0_11, %c0_12, %c0_13], %29 {strides = array<i32>} : memref<1x8x128xf32, #tpu.memory_space<vmem>>, vector<1x8x128xf32>,
    return
  }
  func.func @transform_0(%arg0: i32, %arg1: memref<2xf32, #tpu.memory_space<smem>>) -> (i32, i32) {
    %c0_i32 = arith.constant 0 : i32
    %c0_i32_0 = arith.constant 0 : i32
    %c0_i32_1 = arith.constant 0 : i32
    return %c0_i32, %c0_i32_0 : i32, i32
  }
  func.func @transform_1(%arg0: i32, %arg1: memref<2xf32, #tpu.memory_space<smem>>) -> (i32, i32) {
    %c0_i32 = arith.constant 0 : i32
    %c0_i32_0 = arith.constant 0 : i32
    %c0_i32_1 = arith.constant 0 : i32
    return %c0_i32, %c0_i32_0 : i32, i32
  }
  func.func @transform_2(%arg0: i32, %arg1: memref<2xf32, #tpu.memory_space<smem>>) -> (i32, i32) {
    %c0_i32 = arith.constant 0 : i32
    %c0_i32_0 = arith.constant 0 : i32
    %c0_i32_1 = arith.constant 0 : i32
    return %c0_i32, %c0_i32_0 : i32, i32
  }
  func.func @transform_3(%arg0: i32, %arg1: memref<2xf32, #tpu.memory_space<smem>>) -> (i32, i32) {
    %c0_i32 = arith.constant 0 : i32
    %c0_i32_0 = arith.constant 0 : i32
    %c0_i32_1 = arith.constant 0 : i32
    return %c0_i32, %c0_i32_0 : i32, i32
  }
  func.func @transform_4(%arg0: i32, %arg1: memref<2xf32, #tpu.memory_space<smem>>) -> (i32, i32, i32) {
    %c0_i32 = arith.constant 0 : i32
    %c0_i32_0 = arith.constant 0 : i32
    %c0_i32_1 = arith.constant 0 : i32
    %c0_i32_2 = arith.constant 0 : i32
    return %c0_i32, %c0_i32_0, %c0_i32_1 : i32, i32, i32
  }
}

</mosaic_0001>

<llo_original>
// kernel: tpu_custom_call.1
$region0: #{tpu_custom_call.1}
  #allocation0 [shape = 'u32[]', space=smem, size = 0x4, offset = 0x4, fixed_abs, tag = 'smem constant byte address 0x4 - core index']
  #allocation1 [shape = 'u32[144,128]{1,0:T(1,128)}', space=vmem, size = 0x12000, scoped, tag = 'internal scratch']
  #allocation2 [shape = 's32[1]{0}', space=sflag, size = 0x4, scoped, tag = 'scoped memory for tpu_custom_call.1']
  #allocation3 [shape = 'u8[512]{0}', space=smem, size = 0x200, scoped, tag = 'prefetched SMEM operand 0']
  %s0 = inlined_call_operand.hbm [shape: f32[2], index: 0, kind: input, shape index: {}]
  %s1 = inlined_call_operand.hbm [shape: f32[16,128], index: 1, kind: input, shape index: {}]
  %s2 = inlined_call_operand.hbm [shape: f32[16,128], index: 2, kind: input, shape index: {}]
  %s3 = inlined_call_operand.hbm [shape: f32[16,128], index: 3, kind: input, shape index: {}]
  %s4 = inlined_call_operand.hbm [shape: f32[16,128], index: 4, kind: input, shape index: {}]
  %s5 = inlined_call_operand.hbm [shape: f32[1,8,128], index: 5, kind: output, shape index: {}]
  %s6 = sld [smem:[#allocation0]]
  $region42: #{tpu_custom_call.1} parent=0
    _
  %s8 = ssub.s32 1, %s6
  %s9 = scalar_select 0, %s8, %s6
  %11 = dma.hbm_to_smem %s0, 16, [#allocation3], [#allocation2]
  %12 = dma.done [#allocation2], 16
  %13 = sfence
  $region1: #{tpu_custom_call.1} parent=0
    #allocation4 [shape = 'u8[8192]{0}', space=vmem, size = 0x2000, scoped, tag = 'input window, operand 1, single buffered']
    #allocation5 [shape = 's32[1]{0}', space=sflag, size = 0x4, scoped, tag = 'scoped memory for tpu_custom_call.1']
    #allocation6 [shape = 's32[1]{0}', space=sflag, size = 0x4, scoped, tag = 'scoped memory for tpu_custom_call.1']
    #allocation7 [shape = 'u8[8192]{0}', space=vmem, size = 0x2000, scoped, tag = 'input window, operand 2, single buffered']
    #allocation8 [shape = 's32[1]{0}', space=sflag, size = 0x4, scoped, tag = 'scoped memory for tpu_custom_call.1']
    #allocation9 [shape = 'u8[8192]{0}', space=vmem, size = 0x2000, scoped, tag = 'input window, operand 3, single buffered']
    #allocation10 [shape = 'u8[8192]{0}', space=vmem, size = 0x2000, scoped, tag = 'input window, operand 4, single buffered']
    #allocation11 [shape = 's32[1]{0}', space=sflag, size = 0x4, scoped, tag = 'scoped memory for tpu_custom_call.1']
    #allocation12 [shape = 'u8[4096]{0}', space=vmem, size = 0x1000, scoped, tag = 'output window, operand 0, single buffered']
    %14 = vsyncpa [#allocation5], 0
    %15 = vsyncpa [#allocation8], 0
    %16 = vsyncpa [#allocation11], 0
    %17 = vsyncpa [#allocation6], 0
    // Predicated region
    $region2: #{tpu_custom_call.1} parent=1 // pred_check
      _
    $region3: #{tpu_custom_call.1} parent=1 // pred_check_branch
      %19 = sbr.rel (0) target = $region5
    $region4: #{tpu_custom_call.1} parent=1 // pred_region
      %s21 = ssub.s32 256, 256
      %22 = vsyncadd [#allocation5], %s21
      %s23 = sshll.u32 [#allocation4], 4
      %s24 = int_to_ptr.vmem [resolvable:$true] %s23
      %29 = dma.hbm_to_vmem [thread:$0]  %s1, 256, %s24, [#allocation5], 128, 128, 8
    $region5: #{tpu_custom_call.1} parent=1 // pred_fallthru
      _
    // Predicated region
    $region6: #{tpu_custom_call.1} parent=1 // pred_check
      _
    $region7: #{tpu_custom_call.1} parent=1 // pred_check_branch
      %31 = sbr.rel (0) target = $region9
    $region8: #{tpu_custom_call.1} parent=1 // pred_region
      %s33 = ssub.s32 256, 256
      %34 = vsyncadd [#allocation8], %s33
      %s35 = sshll.u32 [#allocation7], 4
      %s36 = int_to_ptr.vmem [resolvable:$true] %s35
      %41 = dma.hbm_to_vmem [thread:$0]  %s2, 256, %s36, [#allocation8], 128, 128, 8
    $region9: #{tpu_custom_call.1} parent=1 // pred_fallthru
      _
    // Predicated region
    $region10: #{tpu_custom_call.1} parent=1 // pred_check
      _
    $region11: #{tpu_custom_call.1} parent=1 // pred_check_branch
      %43 = sbr.rel (0) target = $region13
    $region12: #{tpu_custom_call.1} parent=1 // pred_region
      %s45 = ssub.s32 256, 256
      %46 = vsyncadd [#allocation8], %s45
      %s47 = sshll.u32 [#allocation9], 4
      %s48 = int_to_ptr.vmem [resolvable:$true] %s47
      %53 = dma.hbm_to_vmem [thread:$0]  %s3, 256, %s48, [#allocation8], 128, 128, 8
    $region13: #{tpu_custom_call.1} parent=1 // pred_fallthru
      _
    // Predicated region
    $region14: #{tpu_custom_call.1} parent=1 // pred_check
      _
    $region15: #{tpu_custom_call.1} parent=1 // pred_check_branch
      %55 = sbr.rel (0) target = $region17
    $region16: #{tpu_custom_call.1} parent=1 // pred_region
      %s57 = ssub.s32 256, 256
      %58 = vsyncadd [#allocation11], %s57
      %s59 = sshll.u32 [#allocation10], 4
      %s60 = int_to_ptr.vmem [resolvable:$true] %s59
      %65 = dma.hbm_to_vmem [thread:$0]  %s4, 256, %s60, [#allocation11], 128, 128, 8
    $region17: #{tpu_custom_call.1} parent=1 // pred_fallthru
      _
    // Predicated region
    $region18: #{tpu_custom_call.1} parent=1 // pred_check
      _
    $region19: #{tpu_custom_call.1} parent=1 // pred_check_branch
      %67 = sbr.rel (0) target = $region21
    $region20: #{tpu_custom_call.1} parent=1 // pred_region
      %68 = dma.done [#allocation5], 256
    $region21: #{tpu_custom_call.1} parent=1 // pred_fallthru
      _
    // Predicated region
    $region22: #{tpu_custom_call.1} parent=1 // pred_check
      _
    $region23: #{tpu_custom_call.1} parent=1 // pred_check_branch
      %70 = sbr.rel (0) target = $region25
    $region24: #{tpu_custom_call.1} parent=1 // pred_region
      %71 = dma.done [#allocation8], 256
    $region25: #{tpu_custom_call.1} parent=1 // pred_fallthru
      _
    // Predicated region
    $region26: #{tpu_custom_call.1} parent=1 // pred_check
      _
    $region27: #{tpu_custom_call.1} parent=1 // pred_check_branch
      %73 = sbr.rel (0) target = $region29
    $region28: #{tpu_custom_call.1} parent=1 // pred_region
      %74 = dma.done [#allocation8], 256
    $region29: #{tpu_custom_call.1} parent=1 // pred_fallthru
      _
    // Predicated region
    $region30: #{tpu_custom_call.1} parent=1 // pred_check
      _
    $region31: #{tpu_custom_call.1} parent=1 // pred_check_branch
      %76 = sbr.rel (0) target = $region33
    $region32: #{tpu_custom_call.1} parent=1 // pred_region
      %77 = dma.done [#allocation11], 256
    $region33: #{tpu_custom_call.1} parent=1 // pred_fallthru
      _
    %v78 = vld [vmem:[#allocation4] sm:$0xff]
    %v79 = vld [vmem:[#allocation4 + $0x8] sm:$0xff]
    %v80 = vld [vmem:[#allocation7] sm:$0xff]
    %v81 = vld [vmem:[#allocation7 + $0x8] sm:$0xff]
    %v82 = vsub.f32 %v78, %v80
    %v83 = vsub.f32 %v79, %v81
    %v84 = vmul.f32 %v82, %v82
    %v85 = vmul.f32 %v83, %v83
    %v86 = vadd.f32 %v84, %v85
    %87 = vadd.xlane.f32.xlu0 %v86
    %v88 = vpop.xlane.xlu0 %87
    %v89 = vrot.slane %v88, 4
    %v90 = vadd.f32 %v88, %v89
    %v91 = vrot.slane %v90, 2
    %v92 = vadd.f32 %v90, %v91
    %v93 = vrot.slane %v92, 1
    %v94 = vadd.f32 %v92, %v93
    %s95 = vtos %v94
    %v96 = vld [vmem:[#allocation9] sm:$0xff]
    %v97 = vld [vmem:[#allocation9 + $0x8] sm:$0xff]
    %v98 = vld [vmem:[#allocation10] sm:$0xff]
    %v99 = vld [vmem:[#allocation10 + $0x8] sm:$0xff]
    %v100 = vmax.f32 %v96, 0.0
    %v101 = vmax.f32 %v97, 0.0
    %v102 = vmul.f32 %v96, %v98
    %v103 = vmul.f32 %v97, %v99
    %v104 = vsub.f32 %v100, %v102
    %v105 = vsub.f32 %v101, %v103
    %v106 = vand.u32 2147483647, %v96
    %v107 = vand.u32 2147483647, %v97
    %v108 = vsub.f32 0.0, %v106
    %v109 = vsub.f32 0.0, %v107
    %v110 = vmul.f32 %v108, 1.442695
    %v111 = vpow.pop %v110
    %v112 = vmul.f32 %v109, 1.442695
    %v113 = vpow.pop %v112
    %v114 = vadd.f32 %v111, 1.0
    %v115 = vlog2.pop %v114
    %v116 = vmul.f32 %v115, 0.6931472
    %v117 = vmul.f32 -0.5, %v111
    %v118 = vadd.f32 %v117, 1.0
    %v119 = vmul.f32 %v118, %v111
    %v120 = vand.u32 2147483647, %v111
    %vm121 = vcmp.lt.f32.partialorder %v120, 0.0004427343
    %v122 = vsel %vm121, %v119, %v116
    %v123 = vadd.f32 %v113, 1.0
    %v124 = vlog2.pop %v123
    %v125 = vmul.f32 %v124, 0.6931472
    %v126 = vmul.f32 -0.5, %v113
    %v127 = vadd.f32 %v126, 1.0
    %v128 = vmul.f32 %v127, %v113
    %v129 = vand.u32 2147483647, %v113
    %vm130 = vcmp.lt.f32.partialorder %v129, 0.0004427343
    %v131 = vsel %vm130, %v128, %v125
    %v132 = vadd.f32 %v104, %v122
    %v133 = vadd.f32 %v105, %v131
    %v134 = vadd.f32 %v132, %v133
    %135 = vadd.xlane.f32.xlu0 %v134
    %v136 = vpop.xlane.xlu0 %135
    %v137 = vrot.slane %v136, 4
    %v138 = vadd.f32 %v136, %v137
    %v139 = vrot.slane %v138, 2
    %v140 = vadd.f32 %v138, %v139
    %v141 = vrot.slane %v140, 1
    %v142 = vadd.f32 %v140, %v141
    %s143 = vtos %v142
    %s144 = sld [smem:[#allocation3]]
    %s145 = smul.f32 %s144, %s95
    %s146 = sld [smem:[#allocation3 + $0x1]]
    %s147 = smul.f32 %s146, %s143
    %s148 = sadd.f32 %s145, %s147
    %v149 = vstv %s148
    %150 = vst [vmem:[#allocation12] sm:$0xff] %v149
    // Predicated region
    $region34: #{tpu_custom_call.1} parent=1 // pred_check
      _
    $region35: #{tpu_custom_call.1} parent=1 // pred_check_branch
      %152 = sbr.rel (0) target = $region37
    $region36: #{tpu_custom_call.1} parent=1 // pred_region
      %s154 = ssub.s32 128, 128
      %155 = vsyncadd [#allocation6], %s154
      %s157 = sshll.u32 [#allocation12], 4
      %s158 = int_to_ptr.vmem [resolvable:$true] %s157
      %160 = dma.vmem_to_hbm [thread:$0]  %s158, 128, %s5, [#allocation6]
    $region37: #{tpu_custom_call.1} parent=1 // pred_fallthru
      _
    // Predicated region
    $region38: #{tpu_custom_call.1} parent=1 // pred_check
      _
    $region39: #{tpu_custom_call.1} parent=1 // pred_check_branch
      %162 = sbr.rel (0) target = $region41
    $region40: #{tpu_custom_call.1} parent=1 // pred_region
      %163 = dma.done [#allocation6], 128
    $region41: #{tpu_custom_call.1} parent=1 // pred_fallthru
      _
    %164 = vsyncpa [#allocation5], 1
    %165 = vsyncpa [#allocation8], 1
    %166 = vsyncpa [#allocation11], 1
    %167 = vsyncpa [#allocation6], 1

</llo_original>
